<compile_context>
chip_gen: v7x
topology: tpu7x:2x2x1
jax: 0.10.0
libtpu: 0.0.40
codegen_flags: <defaults>
</compile_context>

<pallas_src>
import functools

import jax
import jax.numpy as jnp
from jax.experimental import pallas as pl
from jax.experimental.pallas import tpu as pltpu

EPS = 1e-08
GAMMA_NEG = 4.0   # binary fast path hard-codes these module defaults
GAMMA_POS = 1.0
_MIB = 1024 * 1024


def _tpu_defaults():
    """Return (core_split, target_block_bytes, vmem_limit_cap) for this TPU gen."""
    core_split = 1
    block_bytes = 4 * _MIB          # safe on v7x's 64 MiB VMEM
    vmem_cap = 40 * _MIB
    try:
        kind = jax.devices()[0].device_kind.lower()
    except Exception:
        kind = ""
    # Chips exposing 2 TensorCores through a "parallel" grid axis.
    if any(tag in kind for tag in ("v7", "7x", "v4", "v5p")):
        core_split = 2
    try:
        vmem = int(getattr(pltpu.get_tpu_info(), "vmem_capacity_bytes", 0) or 0)
    except Exception:
        vmem = 0
    if vmem >= 96 * _MIB:           # v5e / v6e / v4 / v5p: 128 MiB VMEM per core
        block_bytes = 8 * _MIB
        vmem_cap = 80 * _MIB
    return core_split, block_bytes, vmem_cap


def _asl_kernel(x_ref, y_ref, acc_ref, *,
                B, C, tile_b, cb, nb, nc, nbh, nch,
                split_batch, row_tail, col_tail, phantom, binary_targets):
    c = pl.program_id(0)   # core-split axis ("parallel")
    i = pl.program_id(1)   # batch-block axis ("arbitrary", reduction)
    j = pl.program_id(2)   # class-block axis ("arbitrary", reduction)
    if split_batch:
        bi, cj = c * nbh + i, j            # logical (unclamped) block indices
    else:
        bi, cj = i, c * nch + j

    # Output block for this `c` stays resident across all (i, j): zero it once.
    @pl.when((i == 0) & (j == 0))
    def _():
        acc_ref[...] = jnp.zeros_like(acc_ref)

    def accumulate(base, weighted):
        # Fold rows into the (8, cb) vector accumulators (pure VPU vreg adds).
        if tile_b % 8 == 0:
            acc_ref[0, 0] += base.reshape(tile_b // 8, 8, cb).sum(axis=0)
            acc_ref[0, 1] += weighted.reshape(tile_b // 8, 8, cb).sum(axis=0)
        else:
            # Tiny-batch fallback (tile_b == B < 8): one small sublane reduce.
            acc_ref[0, 0, 0:1, :] += base.sum(axis=0, keepdims=True)
            acc_ref[0, 1, 0:1, :] += weighted.sum(axis=0, keepdims=True)

    def compute_block():
        x = x_ref[...].astype(jnp.float32)       # xs_pos
        xs_neg = 1.0 - x
        if binary_targets:
            yraw = y_ref[...]
            if jnp.issubdtype(y_ref.dtype, jnp.floating):
                pos = yraw > 0.5
            else:                                 # bool / int8 / uint8 targets
                pos = yraw > 0
            #   base = log(clamp(x))      if y == 1 else log(clamp(1 - x))
            #   w    = (1 - x)^gamma_pos  if y == 1 else x^gamma_neg
            base = jnp.log(jnp.maximum(jnp.where(pos, x, xs_neg), EPS))
            x2 = x * x
            w = jnp.where(pos, xs_neg, x2 * x2)   # gamma_pos=1, gamma_neg=4
        else:
            # General (soft-label-safe) form, mirrors the PyTorch module exactly.
            y = y_ref[...].astype(jnp.float32)
            anti = 1.0 - y
            base = (y * jnp.log(jnp.maximum(x, EPS))
                    + anti * jnp.log(jnp.maximum(xs_neg, EPS)))
            w = jnp.power(1.0 - x * y - xs_neg * anti,
                          GAMMA_POS * y + GAMMA_NEG * anti)
        weighted = base * w

        if not (row_tail or col_tail):
            accumulate(base, weighted)
            return

        is_row_tail = (bi == nb - 1) if row_tail else None
        is_col_tail = (cj == nc - 1) if col_tail else None
        if row_tail and col_tail:
            is_tail = jnp.logical_or(is_row_tail, is_col_tail)
        else:
            is_tail = is_row_tail if row_tail else is_col_tail

        @pl.when(jnp.logical_not(is_tail))        # interior blocks: no mask cost
        def _():
            accumulate(base, weighted)

        @pl.when(is_tail)                         # only tail blocks pay the mask
        def _():
            mask = None
            if row_tail:
                rows = jax.lax.broadcasted_iota(jnp.int32, (tile_b, 1), 0)
                mask = (bi * tile_b + rows) < B
            if col_tail:
                cols = jax.lax.broadcasted_iota(jnp.int32, (1, cb), 1)
                cmask = (cj * cb + cols) < C
                mask = cmask if mask is None else jnp.logical_and(mask, cmask)
            accumulate(jnp.where(mask, base, 0.0),
                       jnp.where(mask, weighted, 0.0))

    if phantom:
        # Over-hung blocks of an uneven core split carry no real data: skip.
        @pl.when((bi < nb) if split_batch else (cj < nc))
        def _():
            compute_block()
    else:
        compute_block()


def asymmetric_loss_pallas(x, y, *, core_split=None, target_block_bytes=None,
                           assume_binary_targets=None):
    """Forward pass of AsymmetricLossOptimized(gamma_neg=4, gamma_pos=1).

    x: predicted probabilities (B, C).  y: multi-label targets (B, C); may be
    float, bool, or int8/uint8 (narrow dtypes cut HBM traffic - pass them
    narrow, don't cast in the caller).

    assume_binary_targets: True -> fast path assuming y in {0, 1} (no jnp.power,
    one log/element); False -> exact soft-label path.  Default (None): True for
    bool/integer y, False for floating y.
    """
    B, C = x.shape
    assert y.shape == (B, C)
    if assume_binary_targets is None:
        assume_binary_targets = not jnp.issubdtype(jnp.dtype(y.dtype), jnp.floating)
    denom = float(B * C)

    def_split, def_block_bytes, vmem_cap = _tpu_defaults()
    if core_split is None:
        core_split = def_split
    if target_block_bytes is None:
        target_block_bytes = def_block_bytes

    itemsize = max(jnp.dtype(x.dtype).itemsize, jnp.dtype(y.dtype).itemsize)

    # --- class (lane) tiling: largest multiple of 128 <= min(C, 2048).
    if C >= 128:
        cb = min((C // 128) * 128, 2048)
    else:
        cb = C                      # tiny class count: full-dim block
    nc = pl.cdiv(C, cb)
    col_tail = (nc * cb != C)

    # --- batch (sublane) tiling sized against the per-input VMEM block budget.
    rows = max(8, (target_block_bytes // (cb * itemsize)) // 8 * 8)
    if B % 8 == 0:
        tile_b = min(rows, B)
    elif B > 8:
        tile_b = min(rows, (B // 8) * 8)
    else:
        tile_b = B                  # tiny batch: full-dim block
    nb = pl.cdiv(B, tile_b)
    row_tail = (nb * tile_b != B)

    # --- TensorCore split: batch blocks when possible, else class blocks.
    P = max(1, int(core_split))
    split_batch, nbh, nch = True, nb, nc
    if P > 1:
        if nb >= P:
            nbh = pl.cdiv(nb, P)
        elif nc >= P:
            split_batch, nch = False, pl.cdiv(nc, P)
        else:
            P = 1
    phantom = (P * nbh != nb) if split_batch else (P * nch != nc)

    if split_batch:
        def in_map(c, i, j):
            return (jnp.minimum(c * nbh + i, nb - 1), j)
    else:
        def in_map(c, i, j):
            return (i, jnp.minimum(c * nch + j, nc - 1))

    kernel = functools.partial(
        _asl_kernel, B=B, C=C, tile_b=tile_b, cb=cb, nb=nb, nc=nc,
        nbh=nbh, nch=nch, split_batch=split_batch,
        row_tail=row_tail, col_tail=col_tail, phantom=phantom,
        binary_targets=assume_binary_targets)

    blk_bytes = tile_b * cb * (jnp.dtype(x.dtype).itemsize
                               + jnp.dtype(y.dtype).itemsize)
    vmem_est = 2 * blk_bytes + 2 * (2 * 8 * cb * 4) + _MIB
    vmem_limit = int(max(min(vmem_cap, max(32 * _MIB, (3 * vmem_est) // 2)),
                         vmem_est + 2 * _MIB))

    partials = pl.pallas_call(
        kernel,
        out_shape=jax.ShapeDtypeStruct((P, 2, 8, cb), jnp.float32),
        grid_spec=pltpu.PrefetchScalarGridSpec(
            num_scalar_prefetch=0,
            grid=(P, nbh, nch),
            in_specs=[
                pl.BlockSpec((tile_b, cb), in_map),
                pl.BlockSpec((tile_b, cb), in_map),
            ],
            out_specs=pl.BlockSpec((1, 2, 8, cb), lambda c, i, j: (c, 0, 0, 0)),
        ),
        compiler_params=pltpu.CompilerParams(
            dimension_semantics=("parallel", "arbitrary", "arbitrary"),
            vmem_limit_bytes=vmem_limit,
        ),
    )(x, y)

    # Tiny epilogue: one fused cross-lane reduce + final scalar math.
    sums = partials.sum(axis=(0, 2, 3))     # [scale0, scale1]
    scale0, scale1 = sums[0], sums[1]
    return (-scale1 / denom) * scale0 / (scale1 + EPS)


def asymmetric_loss_ref(x, y):
    """Pure-JAX reference mirroring the PyTorch forward exactly."""
    x = x.astype(jnp.float32)
    y = y.astype(jnp.float32)
    anti = 1.0 - y
    xs_neg = 1.0 - x
    loss = (y * jnp.log(jnp.maximum(x, EPS))
            + anti * jnp.log(jnp.maximum(xs_neg, EPS)))
    scale0 = loss.sum()
    w = jnp.power(1.0 - x * y - xs_neg * anti, GAMMA_POS * y + GAMMA_NEG * anti)
    loss = loss * w
    scale1 = loss.sum()
    return -loss.sum() / (x.shape[0] * y.shape[1]) * scale0 / (scale1 + EPS)


if __name__ == "__main__":
    key = jax.random.PRNGKey(0)
    kx, ky, ks = jax.random.split(key, 3)

    # Ragged batch: exercises row-tail masking + default core split.
    B, C = 20, 256
    x = jax.random.uniform(kx, (B, C), dtype=jnp.float32, minval=0.01, maxval=0.99)
    y = (jax.random.uniform(ky, (B, C), dtype=jnp.float32) > 0.7).astype(jnp.float32)
    ref = asymmetric_loss_ref(x, y)

    out_bin = jax.block_until_ready(
        asymmetric_loss_pallas(x, y, assume_binary_targets=True))
    out_gen = jax.block_until_ready(
        asymmetric_loss_pallas(x, y, assume_binary_targets=False))
    out_i8 = jax.block_until_ready(
        asymmetric_loss_pallas(x, y.astype(jnp.int8)))   # narrow-y fast path
    assert jnp.allclose(out_bin, ref, rtol=1e-3, atol=1e-5), (out_bin, ref)
    assert jnp.allclose(out_gen, ref, rtol=1e-3, atol=1e-5), (out_gen, ref)
    assert jnp.allclose(out_i8, ref, rtol=1e-3, atol=1e-5), (out_i8, ref)

    # Ragged C + forced 2-way split with nb == 1 -> class-axis split + col tail.
    B2, C2 = 8, 300
    x2 = jax.random.uniform(kx, (B2, C2), dtype=jnp.float32, minval=0.01, maxval=0.99)
    y2 = (jax.random.uniform(ky, (B2, C2), dtype=jnp.float32) > 0.6).astype(jnp.float32)
    ref2 = asymmetric_loss_ref(x2, y2)
    out2 = jax.block_until_ready(
        asymmetric_loss_pallas(x2, y2, core_split=2, assume_binary_targets=True))
    assert jnp.allclose(out2, ref2, rtol=1e-3, atol=1e-5), (out2, ref2)

    # Soft (non-binary) labels: float y defaults to the exact general path.
    y_soft = jax.random.uniform(ks, (B, C), dtype=jnp.float32)
    ref_soft = asymmetric_loss_ref(x, y_soft)
    out_soft = jax.block_until_ready(asymmetric_loss_pallas(x, y_soft))
    assert jnp.allclose(out_soft, ref_soft, rtol=1e-3, atol=1e-5), (out_soft, ref_soft)

    # Tiny batch (< 8 rows): full-dim sublane block fallback.
    B3, C3 = 4, 256
    x3 = jax.random.uniform(ky, (B3, C3), dtype=jnp.float32, minval=0.01, maxval=0.99)
    y3 = (jax.random.uniform(kx, (B3, C3), dtype=jnp.float32) > 0.5).astype(jnp.float32)
    out3 = jax.block_until_ready(
        asymmetric_loss_pallas(x3, y3, assume_binary_targets=True))
    assert jnp.allclose(out3, asymmetric_loss_ref(x3, y3), rtol=1e-3, atol=1e-5)

    # bf16 probabilities + int8 targets (minimal HBM traffic); check finiteness.
    out_bf16 = jax.block_until_ready(
        asymmetric_loss_pallas(x.astype(jnp.bfloat16), y.astype(jnp.int8)))
    assert bool(jnp.isfinite(out_bf16)), out_bf16

    print("KERNEL_OK")
</pallas_src>

<mosaic_0001>
module attributes {stable_mosaic.version = 11 : i64} {
  func.func @_asl_kernel(%arg0: i32, %arg1: i32, %arg2: i32, %arg3: memref<16x256xf32, #tpu.memory_space<vmem>>, %arg4: memref<16x256xf32, #tpu.memory_space<vmem>>, %arg5: memref<1x2x8x256xf32, #tpu.memory_space<vmem>>) attributes {dimension_semantics = [#tpu.dimension_semantics<parallel>, #tpu.dimension_semantics<arbitrary>, #tpu.dimension_semantics<arbitrary>], iteration_bounds = array<i64: 1, 2, 1>, scalar_prefetch = 0 : i64, scratch_operands = 0 : i64, tpu.core_type = #tpu.core_type<tc>, window_params = [{transform_indices = @transform_0, window_bounds = array<i64: 16, 256>}, {transform_indices = @transform_1, window_bounds = array<i64: 16, 256>}, {transform_indices = @transform_2, window_bounds = array<i64: 1, 2, 8, 256>}]} {
    %c2_i32 = arith.constant 2 : i32
    %0 = arith.muli %arg0, %c2_i32 : i32
    %1 = arith.addi %0, %arg1 : i32
    %c0_i32 = arith.constant 0 : i32
    %2 = arith.cmpi eq, %arg1, %c0_i32 : i32
    %c0_i32_0 = arith.constant 0 : i32
    %3 = arith.cmpi eq, %arg2, %c0_i32_0 : i32
    %4 = arith.andi %2, %3 : i1
    %5 = arith.extui %4 : i1 to i32
    %c0_i32_1 = arith.constant 0 : i32
    %6 = arith.cmpi ne, %5, %c0_i32_1 : i32
    scf.if %6 {
      %cst_9 = arith.constant 0.000000e+00 : f32
      %27 = vector.broadcast %cst_9 : f32 to vector<1x2x8x256xf32>
      %c0_10 = arith.constant 0 : index
      %c0_11 = arith.constant 0 : index
      %c0_12 = arith.constant 0 : index
      %c0_13 = arith.constant 0 : index
      %28 = vector.load %arg5[%c0_10, %c0_11, %c0_12, %c0_13] : memref<1x2x8x256xf32, #tpu.memory_space<vmem>>, vector<1x2x8x256xf32>
      tpu.vector_store %arg5[%c0_10, %c0_11, %c0_12, %c0_13], %27 {strides = array<i32>} : memref<1x2x8x256xf32, #tpu.memory_space<vmem>>, vector<1x2x8x256xf32>,
    } else {
    }
    %c0 = arith.constant 0 : index
    %c0_2 = arith.constant 0 : index
    %7 = vector.load %arg3[%c0, %c0_2] : memref<16x256xf32, #tpu.memory_space<vmem>>, vector<16x256xf32>
    %cst = arith.constant 1.000000e+00 : f32
    %8 = vector.broadcast %cst : f32 to vector<16x256xf32>
    %9 = arith.subf %8, %7 : vector<16x256xf32>
    %c0_3 = arith.constant 0 : index
    %c0_4 = arith.constant 0 : index
    %10 = vector.load %arg4[%c0_3, %c0_4] : memref<16x256xf32, #tpu.memory_space<vmem>>, vector<16x256xf32>
    %cst_5 = arith.constant 5.000000e-01 : f32
    %11 = vector.broadcast %cst_5 : f32 to vector<16x256xf32>
    %12 = arith.cmpf ogt, %10, %11 : vector<16x256xf32>
    %13 = arith.select %12, %7, %9 : vector<16x256xi1>, vector<16x256xf32>
    %cst_6 = arith.constant 9.99999993E-9 : f32
    %14 = vector.broadcast %cst_6 : f32 to vector<16x256xf32>
    %15 = arith.maximumf %13, %14 : vector<16x256xf32>
    %16 = math.log %15 : vector<16x256xf32>
    %17 = arith.mulf %7, %7 : vector<16x256xf32>
    %18 = arith.mulf %17, %17 : vector<16x256xf32>
    %19 = arith.select %12, %9, %18 : vector<16x256xi1>, vector<16x256xf32>
    %20 = arith.mulf %16, %19 : vector<16x256xf32>
    %c1_i32 = arith.constant 1 : i32
    %21 = arith.cmpi eq, %1, %c1_i32 : i32
    %true = arith.constant true
    %22 = arith.xori %21, %true : i1
    %23 = arith.extui %22 : i1 to i32
    %c0_i32_7 = arith.constant 0 : i32
    %24 = arith.cmpi ne, %23, %c0_i32_7 : i32
    scf.if %24 {
      %c0_9 = arith.constant 0 : index
      %c0_10 = arith.constant 0 : index
      %c0_11 = arith.constant 0 : index
      %c0_12 = arith.constant 0 : index
      %27 = vector.load %arg5[%c0_9, %c0_10, %c0_11, %c0_12] : memref<1x2x8x256xf32, #tpu.memory_space<vmem>>, vector<1x1x8x256xf32>
      %28 = vector.shape_cast %27 : vector<1x1x8x256xf32> to vector<8x256xf32>
      %29 = vector.shape_cast %16 : vector<16x256xf32> to vector<2x8x256xf32>
      %cst_13 = arith.constant dense<0.000000e+00> : vector<8x256xf32>
      %30 = vector.multi_reduction <add>, %29, %cst_13 [0] : vector<2x8x256xf32> to vector<8x256xf32>
      %31 = arith.addf %28, %30 : vector<8x256xf32>
      %c0_14 = arith.constant 0 : index
      %c0_15 = arith.constant 0 : index
      %c0_16 = arith.constant 0 : index
      %c0_17 = arith.constant 0 : index
      %32 = vector.load %arg5[%c0_14, %c0_15, %c0_16, %c0_17] : memref<1x2x8x256xf32, #tpu.memory_space<vmem>>, vector<1x1x8x256xf32>
      %33 = vector.shape_cast %32 : vector<1x1x8x256xf32> to vector<8x256xf32>
      %34 = vector.shape_cast %31 : vector<8x256xf32> to vector<1x1x8x256xf32>
      tpu.vector_store %arg5[%c0_14, %c0_15, %c0_16, %c0_17], %34 {strides = array<i32>} : memref<1x2x8x256xf32, #tpu.memory_space<vmem>>, vector<1x1x8x256xf32>,
      %c0_18 = arith.constant 0 : index
      %c1 = arith.constant 1 : index
      %c0_19 = arith.constant 0 : index
      %c0_20 = arith.constant 0 : index
      %35 = vector.load %arg5[%c0_18, %c1, %c0_19, %c0_20] : memref<1x2x8x256xf32, #tpu.memory_space<vmem>>, vector<1x1x8x256xf32>
      %36 = vector.shape_cast %35 : vector<1x1x8x256xf32> to vector<8x256xf32>
      %37 = vector.shape_cast %20 : vector<16x256xf32> to vector<2x8x256xf32>
      %cst_21 = arith.constant dense<0.000000e+00> : vector<8x256xf32>
      %38 = vector.multi_reduction <add>, %37, %cst_21 [0] : vector<2x8x256xf32> to vector<8x256xf32>
      %39 = arith.addf %36, %38 : vector<8x256xf32>
      %c0_22 = arith.constant 0 : index
      %c1_23 = arith.constant 1 : index
      %c0_24 = arith.constant 0 : index
      %c0_25 = arith.constant 0 : index
      %40 = vector.load %arg5[%c0_22, %c1_23, %c0_24, %c0_25] : memref<1x2x8x256xf32, #tpu.memory_space<vmem>>, vector<1x1x8x256xf32>
      %41 = vector.shape_cast %40 : vector<1x1x8x256xf32> to vector<8x256xf32>
      %42 = vector.shape_cast %39 : vector<8x256xf32> to vector<1x1x8x256xf32>
      tpu.vector_store %arg5[%c0_22, %c1_23, %c0_24, %c0_25], %42 {strides = array<i32>} : memref<1x2x8x256xf32, #tpu.memory_space<vmem>>, vector<1x1x8x256xf32>,
    } else {
    }
    %25 = arith.extui %21 : i1 to i32
    %c0_i32_8 = arith.constant 0 : i32
    %26 = arith.cmpi ne, %25, %c0_i32_8 : i32
    scf.if %26 {
      %27 = tpu.iota {dimensions = array<i32: 0>} : vector<16x1xi32>
      %c16_i32 = arith.constant 16 : i32
      %28 = arith.muli %1, %c16_i32 : i32
      %29 = vector.broadcast %28 : i32 to vector<16x1xi32>
      %30 = arith.addi %29, %27 : vector<16x1xi32>
      %c20_i32 = arith.constant 20 : i32
      %31 = vector.broadcast %c20_i32 : i32 to vector<16x1xi32>
      %32 = arith.cmpi slt, %30, %31 : vector<16x1xi32>
      %cst_9 = arith.constant 0.000000e+00 : f32
      %33 = vector.shape_cast %32 : vector<16x1xi1> to vector<16x1xi1>
      %34 = vector.broadcast %33 : vector<16x1xi1> to vector<16x256xi1>
      %35 = vector.broadcast %cst_9 : f32 to vector<16x256xf32>
      %36 = arith.select %34, %16, %35 : vector<16x256xi1>, vector<16x256xf32>
      %cst_10 = arith.constant 0.000000e+00 : f32
      %37 = vector.shape_cast %32 : vector<16x1xi1> to vector<16x1xi1>
      %38 = vector.broadcast %37 : vector<16x1xi1> to vector<16x256xi1>
      %39 = vector.broadcast %cst_10 : f32 to vector<16x256xf32>
      %40 = arith.select %38, %20, %39 : vector<16x256xi1>, vector<16x256xf32>
      %c0_11 = arith.constant 0 : index
      %c0_12 = arith.constant 0 : index
      %c0_13 = arith.constant 0 : index
      %c0_14 = arith.constant 0 : index
      %41 = vector.load %arg5[%c0_11, %c0_12, %c0_13, %c0_14] : memref<1x2x8x256xf32, #tpu.memory_space<vmem>>, vector<1x1x8x256xf32>
      %42 = vector.shape_cast %41 : vector<1x1x8x256xf32> to vector<8x256xf32>
      %43 = vector.shape_cast %36 : vector<16x256xf32> to vector<2x8x256xf32>
      %cst_15 = arith.constant dense<0.000000e+00> : vector<8x256xf32>
      %44 = vector.multi_reduction <add>, %43, %cst_15 [0] : vector<2x8x256xf32> to vector<8x256xf32>
      %45 = arith.addf %42, %44 : vector<8x256xf32>
      %c0_16 = arith.constant 0 : index
      %c0_17 = arith.constant 0 : index
      %c0_18 = arith.constant 0 : index
      %c0_19 = arith.constant 0 : index
      %46 = vector.load %arg5[%c0_16, %c0_17, %c0_18, %c0_19] : memref<1x2x8x256xf32, #tpu.memory_space<vmem>>, vector<1x1x8x256xf32>
      %47 = vector.shape_cast %46 : vector<1x1x8x256xf32> to vector<8x256xf32>
      %48 = vector.shape_cast %45 : vector<8x256xf32> to vector<1x1x8x256xf32>
      tpu.vector_store %arg5[%c0_16, %c0_17, %c0_18, %c0_19], %48 {strides = array<i32>} : memref<1x2x8x256xf32, #tpu.memory_space<vmem>>, vector<1x1x8x256xf32>,
      %c0_20 = arith.constant 0 : index
      %c1 = arith.constant 1 : index
      %c0_21 = arith.constant 0 : index
      %c0_22 = arith.constant 0 : index
      %49 = vector.load %arg5[%c0_20, %c1, %c0_21, %c0_22] : memref<1x2x8x256xf32, #tpu.memory_space<vmem>>, vector<1x1x8x256xf32>
      %50 = vector.shape_cast %49 : vector<1x1x8x256xf32> to vector<8x256xf32>
      %51 = vector.shape_cast %40 : vector<16x256xf32> to vector<2x8x256xf32>
      %cst_23 = arith.constant dense<0.000000e+00> : vector<8x256xf32>
      %52 = vector.multi_reduction <add>, %51, %cst_23 [0] : vector<2x8x256xf32> to vector<8x256xf32>
      %53 = arith.addf %50, %52 : vector<8x256xf32>
      %c0_24 = arith.constant 0 : index
      %c1_25 = arith.constant 1 : index
      %c0_26 = arith.constant 0 : index
      %c0_27 = arith.constant 0 : index
      %54 = vector.load %arg5[%c0_24, %c1_25, %c0_26, %c0_27] : memref<1x2x8x256xf32, #tpu.memory_space<vmem>>, vector<1x1x8x256xf32>
      %55 = vector.shape_cast %54 : vector<1x1x8x256xf32> to vector<8x256xf32>
      %56 = vector.shape_cast %53 : vector<8x256xf32> to vector<1x1x8x256xf32>
      tpu.vector_store %arg5[%c0_24, %c1_25, %c0_26, %c0_27], %56 {strides = array<i32>} : memref<1x2x8x256xf32, #tpu.memory_space<vmem>>, vector<1x1x8x256xf32>,
    } else {
    }
    return
  }
  func.func @transform_0(%arg0: i32, %arg1: i32, %arg2: i32) -> (i32, i32) {
    %c2_i32 = arith.constant 2 : i32
    %0 = arith.muli %arg0, %c2_i32 : i32
    %1 = arith.addi %0, %arg1 : i32
    %c1_i32 = arith.constant 1 : i32
    %2 = arith.minsi %1, %c1_i32 : i32
    %c0_i32 = arith.constant 0 : i32
    return %2, %arg2 : i32, i32
  }
  func.func @transform_1(%arg0: i32, %arg1: i32, %arg2: i32) -> (i32, i32) {
    %c2_i32 = arith.constant 2 : i32
    %0 = arith.muli %arg0, %c2_i32 : i32
    %1 = arith.addi %0, %arg1 : i32
    %c1_i32 = arith.constant 1 : i32
    %2 = arith.minsi %1, %c1_i32 : i32
    %c0_i32 = arith.constant 0 : i32
    return %2, %arg2 : i32, i32
  }
  func.func @transform_2(%arg0: i32, %arg1: i32, %arg2: i32) -> (i32, i32, i32, i32) {
    %c0_i32 = arith.constant 0 : i32
    %c0_i32_0 = arith.constant 0 : i32
    %c0_i32_1 = arith.constant 0 : i32
    %c0_i32_2 = arith.constant 0 : i32
    return %arg0, %c0_i32, %c0_i32_0, %c0_i32_1 : i32, i32, i32, i32
  }
}

</mosaic_0001>

<llo_original>
// kernel: tpu_custom_call.1
$region0: #{tpu_custom_call.1}
  #allocation0 [shape = 'u32[]', space=smem, size = 0x4, offset = 0x4, fixed_abs, tag = 'smem constant byte address 0x4 - core index']
  #allocation1 [shape = 'u32[144,128]{1,0:T(1,128)}', space=vmem, size = 0x12000, scoped, tag = 'internal scratch']
  %s0 = inlined_call_operand.hbm [shape: f32[20,256], index: 0, kind: input, shape index: {}]
  %s1 = inlined_call_operand.hbm [shape: f32[20,256], index: 1, kind: input, shape index: {}]
  %s2 = inlined_call_operand.hbm [shape: f32[1,2,8,256], index: 2, kind: output, shape index: {}]
  %s3 = sld [smem:[#allocation0]]
  $region61: #{tpu_custom_call.1} parent=0
    _
  %s5 = ssub.s32 1, %s3
  %s6 = scalar_select 0, %s5, %s3
  $region1: #{tpu_custom_call.1} parent=0
    #allocation2 [shape = 'u8[32768]{0}', space=vmem, size = 0x8000, scoped, tag = 'input window, operand 0']
    #allocation3 [shape = 's32[2]{0}', space=sflag, size = 0x8, scoped, tag = 'scoped memory for tpu_custom_call.1']
    #allocation4 [shape = 's32[2]{0}', space=sflag, size = 0x8, scoped, tag = 'scoped memory for tpu_custom_call.1']
    #allocation5 [shape = 'u8[32768]{0}', space=vmem, size = 0x8000, scoped, tag = 'input window, operand 1']
    #allocation6 [shape = 's32[2]{0}', space=sflag, size = 0x8, scoped, tag = 'scoped memory for tpu_custom_call.1']
    #allocation7 [shape = 'u8[16384]{0}', space=vmem, size = 0x4000, scoped, tag = 'output window, operand 0, single buffered']
    %7 = vsyncpa [#allocation3], 0
    %s8 = scalar_lea.sflag [#allocation3], 1
    %9 = vsyncpa %s8, 0
    %10 = vsyncpa [#allocation6], 0
    %s11 = scalar_lea.sflag [#allocation6], 1
    %12 = vsyncpa %s11, 0
    %13 = vsyncpa [#allocation4], 0
    loop: start=0, step=1, limit=4
    $region2: #{tpu_custom_call.1} parent=1 // loop_pre_header
      _
    $region3: #{tpu_custom_call.1} parent=1 // loop_header
      %s15 = sphi 0, %s19
      %p16 = scmp.ge.s32.totalorder %s15, 4
      %s22 = sphi 0, %s41
      %s23 = sphi 0, %s37
      %s24 = sphi 0, %s33
      %s25 = sphi 0, %s22
      %s26 = sphi 0, %s23
      %s27 = sphi 0, %s24
      %s28 = sphi 0, %s25
      %s29 = sphi 0, %s26
      %s30 = sphi 0, %s27
      %s54 = sphi 0, %s56
      %s57 = sphi 0, %s54
      %s58 = sphi 0, %s57
      %s74 = sphi 0, %s58
      %s90 = sphi 0, %s92
      %s93 = sphi 0, %s90
      %s94 = sphi 0, %s93
      %s110 = sphi 0, %s94
      %s116 = sphi 0, %s118
      %s119 = sphi 0, %s116
      %s120 = sphi 0, %s119
      %s136 = sphi 0, %s120
    $region4: #{tpu_custom_call.1} parent=1 // loop_header_branch
      %18 = sbr.rel (%p16) target = $region8
    $region5: #{tpu_custom_call.1} parent=1 // loop_body
      %s20 = ssub.s32 %s15, 1
      %s21 = ssub.s32 %s15, 2
      %s31 = sadd.s32 1, %s24
      %p32 = scmp.ge.s32.totalorder %s31, 1
      %s33 = scalar_select %p32, 0, %s31
      %s34 = sadd.s32 1, %s23
      %s35 = scalar_select %p32, %s34, %s23
      %p36 = scmp.ge.s32.totalorder %s35, 2
      %s37 = scalar_select %p36, 0, %s35
      %s38 = sadd.s32 1, %s22
      %s39 = scalar_select %p36, %s38, %s22
      %p40 = scmp.ge.s32.totalorder %s39, 1
      %s41 = scalar_select %p40, 0, %s39
      %s42 = smul.u32 %s22, 2
      %s43 = sadd.s32 %s42, %s23
      %p44 = scmp.lt.s32.totalorder %s43, 1
      %s45 = scalar_select %p44, %s43, 1
      %s46 = smul.u32 %s41, 2
      %s47 = sadd.s32 %s46, %s37
      %p48 = scmp.lt.s32.totalorder %s47, 1
      %s49 = scalar_select %p48, %s47, 1
      %s50 = ssub.s32 %s45, %s49
      %s51 = ssub.s32 %s24, %s33
      %s52 = sor.u32 %s50, %s51
      %p53 = scmp.eq.s32.totalorder %s52, 0
      %s55 = sadd.s32 %s54, 1
      %s56 = scalar_select %p53, %s54, %s55
      %p59 = pneg %p53
      %p60 = scmp.eq.s32.totalorder %s15, 1
      %p61 = por %p59, %p60
      %p62 = scmp.ne.s32.totalorder %s54, %s57
      %p63 = scmp.eq.s32.totalorder %s15, 0
      %p64 = por %p62, %p63
      %p65 = scmp.ne.s32.totalorder %s54, %s57
      %p66 = scmp.eq.s32.totalorder %s20, 1
      %p67 = por %p65, %p66
      %p68 = scmp.ne.s32.totalorder %s57, %s58
      %p69 = scmp.eq.s32.totalorder %s20, 0
      %p70 = por %p68, %p69
      %p71 = scmp.ne.s32.totalorder %s57, %s58
      %p72 = scmp.eq.s32.totalorder %s21, 1
      %p73 = por %p71, %p72
      %p75 = scmp.ne.s32.totalorder %s58, %s74
      %p76 = scmp.eq.s32.totalorder %s21, 0
      %p77 = por %p75, %p76
      %s78 = smul.u32 %s22, 2
      %s79 = sadd.s32 %s78, %s23
      %p80 = scmp.lt.s32.totalorder %s79, 1
      %s81 = scalar_select %p80, %s79, 1
      %s82 = smul.u32 %s41, 2
      %s83 = sadd.s32 %s82, %s37
      %p84 = scmp.lt.s32.totalorder %s83, 1
      %s85 = scalar_select %p84, %s83, 1
      %s86 = ssub.s32 %s81, %s85
      %s87 = ssub.s32 %s24, %s33
      %s88 = sor.u32 %s86, %s87
      %p89 = scmp.eq.s32.totalorder %s88, 0
      %s91 = sadd.s32 %s90, 1
      %s92 = scalar_select %p89, %s90, %s91
      %p95 = pneg %p89
      %p96 = scmp.eq.s32.totalorder %s15, 1
      %p97 = por %p95, %p96
      %p98 = scmp.ne.s32.totalorder %s90, %s93
      %p99 = scmp.eq.s32.totalorder %s15, 0
      %p100 = por %p98, %p99
      %p101 = scmp.ne.s32.totalorder %s90, %s93
      %p102 = scmp.eq.s32.totalorder %s20, 1
      %p103 = por %p101, %p102
      %p104 = scmp.ne.s32.totalorder %s93, %s94
      %p105 = scmp.eq.s32.totalorder %s20, 0
      %p106 = por %p104, %p105
      %p107 = scmp.ne.s32.totalorder %s93, %s94
      %p108 = scmp.eq.s32.totalorder %s21, 1
      %p109 = por %p107, %p108
      %p111 = scmp.ne.s32.totalorder %s94, %s110
      %p112 = scmp.eq.s32.totalorder %s21, 0
      %p113 = por %p111, %p112
      %s114 = ssub.s32 %s22, %s41
      %p115 = scmp.eq.s32.totalorder %s114, 0
      %s117 = sadd.s32 %s116, 1
      %s118 = scalar_select %p115, %s116, %s117
      %p121 = pneg %p115
      %p122 = scmp.eq.s32.totalorder %s15, 1
      %p123 = por %p121, %p122
      %p124 = scmp.ne.s32.totalorder %s116, %s119
      %p125 = scmp.eq.s32.totalorder %s15, 0
      %p126 = por %p124, %p125
      %p127 = scmp.ne.s32.totalorder %s116, %s119
      %p128 = scmp.eq.s32.totalorder %s20, 1
      %p129 = por %p127, %p128
      %p130 = scmp.ne.s32.totalorder %s119, %s120
      %p131 = scmp.eq.s32.totalorder %s20, 0
      %p132 = por %p130, %p131
      %p133 = scmp.ne.s32.totalorder %s119, %s120
      %p134 = scmp.eq.s32.totalorder %s21, 1
      %p135 = por %p133, %p134
      %p137 = scmp.ne.s32.totalorder %s120, %s136
      %p138 = scmp.eq.s32.totalorder %s21, 0
      %p139 = por %p137, %p138
      %p140 = scmp.le.s32.totalorder 1, %s15
      %p141 = scmp.lt.s32.totalorder %s15, 3
      %p142 = pnand %p140, %p141
      %p143 = pneg %p142
      // Predicated region
      $region9: #{tpu_custom_call.1} parent=5 // pred_check
        _
      $region10: #{tpu_custom_call.1} parent=5 // pred_check_branch
        %145 = sbr.rel (%p142) target = $region12
      $region11: #{tpu_custom_call.1} parent=5 // pred_region
        %s146 = ssub.s32 %s15, 1
      $region12: #{tpu_custom_call.1} parent=5 // pred_fallthru
        _
      %p147 = scmp.lt.s32.totalorder %s15, 2
      // Predicated region
      $region13: #{tpu_custom_call.1} parent=5 // pred_check
        %p148 = pneg %p147
      $region14: #{tpu_custom_call.1} parent=5 // pred_check_branch
        %150 = sbr.rel (%p148) target = $region16
      $region15: #{tpu_custom_call.1} parent=5 // pred_region
        // Predicated region
        $region17: #{tpu_custom_call.1} parent=15 // pred_check
          %p151 = pneg %p64
        $region18: #{tpu_custom_call.1} parent=15 // pred_check_branch
          %153 = sbr.rel (%p151) target = $region20
        $region19: #{tpu_custom_call.1} parent=15 // pred_region
          %s154 = sand.u32 %s54, 1
          %s155 = scalar_lea.sflag [#allocation3], %s154
          %s156 = sand.u32 %s54, 1
          %s157 = smul.addr %s156, 32
          %s158 = scalar_lea.vmem [#allocation2], %s157
          %s159 = smul.u32 %s22, 2
          %s160 = sadd.s32 %s159, %s23
          %p161 = scmp.lt.s32.totalorder %s160, 1
          %s162 = scalar_select %p161, %s160, 1
          %s163 = smul.u32 2, %s162
          %s164 = smul.u32 2, %s24
          %s165 = ssub.s32 3, %s163
          %p166 = scmp.lt.s32.totalorder %s165, 2
          %s167 = scalar_select %p166, %s165, 2
          %s168 = smul.u32 128, %s167
          %s169 = smul.u32 %s168, 2
          %s171 = ssub.s32 512, %s169
          %172 = vsyncadd %s155, %s171
          %p173 = scmp.ne.s32.totalorder 0, %s169
          %s174 = smul.addr %s163, 2
          %s175 = sadd.s32 %s164, %s174
          %s176 = smul.addr %s175, 128
          %s177 = scalar_lea.hbm %s0, %s176
          %s178 = smul.u32 16, %s167
          %s179 = sshll.u32 %s158, 4
          %s180 = int_to_ptr.vmem [resolvable:$true] %s179
          %s181 = sshll.u32 %s178, 4
          %185 = dma.hbm_to_vmem [thread:$0]  (%p173), %s177, %s181, %s180, %s155, 256, 256, 16
        $region20: #{tpu_custom_call.1} parent=15 // pred_fallthru
          _
        // Predicated region
        $region21: #{tpu_custom_call.1} parent=15 // pred_check
          %p186 = pneg %p100
        $region22: #{tpu_custom_call.1} parent=15 // pred_check_branch
          %188 = sbr.rel (%p186) target = $region24
        $region23: #{tpu_custom_call.1} parent=15 // pred_region
          %s189 = sand.u32 %s90, 1
          %s190 = scalar_lea.sflag [#allocation6], %s189
          %s191 = sand.u32 %s90, 1
          %s192 = smul.addr %s191, 32
          %s193 = scalar_lea.vmem [#allocation5], %s192
          %s194 = smul.u32 %s22, 2
          %s195 = sadd.s32 %s194, %s23
          %p196 = scmp.lt.s32.totalorder %s195, 1
          %s197 = scalar_select %p196, %s195, 1
          %s198 = smul.u32 2, %s197
          %s199 = smul.u32 2, %s24
          %s200 = ssub.s32 3, %s198
          %p201 = scmp.lt.s32.totalorder %s200, 2
          %s202 = scalar_select %p201, %s200, 2
          %s203 = smul.u32 128, %s202
          %s204 = smul.u32 %s203, 2
          %s206 = ssub.s32 512, %s204
          %207 = vsyncadd %s190, %s206
          %p208 = scmp.ne.s32.totalorder 0, %s204
          %s209 = smul.addr %s198, 2
          %s210 = sadd.s32 %s199, %s209
          %s211 = smul.addr %s210, 128
          %s212 = scalar_lea.hbm %s1, %s211
          %s213 = smul.u32 16, %s202
          %s214 = sshll.u32 %s193, 4
          %s215 = int_to_ptr.vmem [resolvable:$true] %s214
          %s216 = sshll.u32 %s213, 4
          %220 = dma.hbm_to_vmem [thread:$0]  (%p208), %s212, %s216, %s215, %s190, 256, 256, 16
        $region24: #{tpu_custom_call.1} parent=15 // pred_fallthru
          _
      $region16: #{tpu_custom_call.1} parent=5 // pred_fallthru
        _
      %p221 = scmp.le.s32.totalorder 1, %s15
      %p222 = scmp.lt.s32.totalorder %s15, 3
      %p223 = pnand %p221, %p222
      %p224 = pneg %p223
      // Predicated region
      $region25: #{tpu_custom_call.1} parent=5 // pred_check
        _
      $region26: #{tpu_custom_call.1} parent=5 // pred_check_branch
        %226 = sbr.rel (%p223) target = $region28
      $region27: #{tpu_custom_call.1} parent=5 // pred_region
        %s227 = ssub.s32 %s15, 1
        %s228 = sand.u32 %s57, 1
        %s229 = scalar_lea.sflag [#allocation3], %s228
        %s230 = sand.u32 %s57, 1
        %s231 = smul.addr %s230, 32
        %s232 = scalar_lea.vmem [#allocation2], %s231
        // Predicated region
        $region29: #{tpu_custom_call.1} parent=27 // pred_check
          %p233 = pneg %p70
        $region30: #{tpu_custom_call.1} parent=27 // pred_check_branch
          %235 = sbr.rel (%p233) target = $region32
        $region31: #{tpu_custom_call.1} parent=27 // pred_region
          %236 = dma.done %s229, 512
        $region32: #{tpu_custom_call.1} parent=27 // pred_fallthru
          _
        %s237 = sand.u32 %s93, 1
        %s238 = scalar_lea.sflag [#allocation6], %s237
        %s239 = sand.u32 %s93, 1
        %s240 = smul.addr %s239, 32
        %s241 = scalar_lea.vmem [#allocation5], %s240
        // Predicated region
        $region33: #{tpu_custom_call.1} parent=27 // pred_check
          %p242 = pneg %p106
        $region34: #{tpu_custom_call.1} parent=27 // pred_check_branch
          %244 = sbr.rel (%p242) target = $region36
        $region35: #{tpu_custom_call.1} parent=27 // pred_region
          %245 = dma.done %s238, 512
        $region36: #{tpu_custom_call.1} parent=27 // pred_fallthru
          _
        %s246 = sand.u32 %s57, 1
        %s247 = scalar_lea.sflag [#allocation3], %s246
        %s248 = sand.u32 %s57, 1
        %s249 = smul.addr %s248, 32
        %s250 = scalar_lea.vmem [#allocation2], %s249
        %p251 = pneg %p70
        %p252 = pneg %p67
        %s253 = sand.u32 %s93, 1
        %s254 = scalar_lea.sflag [#allocation6], %s253
        %s255 = sand.u32 %s93, 1
        %s256 = smul.addr %s255, 32
        %s257 = scalar_lea.vmem [#allocation5], %s256
        %p258 = pneg %p106
        %p259 = pneg %p103
        %p260 = pneg %p132
        %p261 = pneg %p129
        %s262 = smul.u32 %s25, 2
        %s263 = sadd.s32 %s262, %s26
        %p264 = scmp.lt.s32.totalorder %s263, 1
        %s265 = scalar_select %p264, %s263, 1
        %s266 = smul.u32 2, %s265
        %s267 = smul.u32 2, %s27
        %s268 = ssub.s32 3, %s266
        %p269 = scmp.lt.s32.totalorder %s268, 2
        %s270 = scalar_select %p269, %s268, 2
        %s271 = smul.u32 128, %s270
        %s272 = smul.u32 %s271, 2
        %s273 = smul.u32 %s25, 2
        %s274 = sadd.s32 %s273, %s26
        %p275 = scmp.lt.s32.totalorder %s274, 1
        %s276 = scalar_select %p275, %s274, 1
        %s277 = smul.u32 2, %s276
        %s278 = smul.u32 2, %s27
        %s279 = ssub.s32 3, %s277
        %p280 = scmp.lt.s32.totalorder %s279, 2
        %s281 = scalar_select %p280, %s279, 2
        %s282 = smul.u32 128, %s281
        %s283 = smul.u32 %s282, 2
        %s284 = smul.u32 %s25, 2
        %s285 = sadd.s32 %s284, %s26
        %p286 = scmp.eq.s32.totalorder %s26, 0
        %p287 = scmp.eq.s32.totalorder %s27, 0
        %p288 = pnand %p286, %p287
        %p289 = pneg %p288
        // Predicated region
        $region37: #{tpu_custom_call.1} parent=27 // pred_check
          _
        $region38: #{tpu_custom_call.1} parent=27 // pred_check_branch
          %291 = sbr.rel (%p288) target = $region40
        $region39: #{tpu_custom_call.1} parent=27 // pred_region
          %292 = vst [vmem:[#allocation7] sm:$0xff] 0.0
          %293 = vst [vmem:[#allocation7 + $0x8] sm:$0xff] 0.0
          %294 = vst [vmem:[#allocation7 + $0x10] sm:$0xff] 0.0
          %295 = vst [vmem:[#allocation7 + $0x18] sm:$0xff] 0.0
        $region40: #{tpu_custom_call.1} parent=27 // pred_fallthru
          _
        %v296 = vld [vmem:[%s232] sm:$0xff]
        %v297 = vld [vmem:[%s232 + $0x8] sm:$0xff]
        %v298 = vld [vmem:[%s232 + $0x10] sm:$0xff]
        %v299 = vld [vmem:[%s232 + $0x18] sm:$0xff]
        %v300 = vsub.f32 1.0, %v296
        %v301 = vsub.f32 1.0, %v297
        %v302 = vsub.f32 1.0, %v298
        %v303 = vsub.f32 1.0, %v299
        %v304 = vld [vmem:[%s241] sm:$0xff]
        %v305 = vld [vmem:[%s241 + $0x8] sm:$0xff]
        %v306 = vld [vmem:[%s241 + $0x10] sm:$0xff]
        %v307 = vld [vmem:[%s241 + $0x18] sm:$0xff]
        %vm308 = vcmp.gt.f32.partialorder %v304, 0.5
        %vm309 = vcmp.gt.f32.partialorder %v305, 0.5
        %vm310 = vcmp.gt.f32.partialorder %v306, 0.5
        %vm311 = vcmp.gt.f32.partialorder %v307, 0.5
        %v312 = vsel %vm308, %v296, %v300
        %v313 = vsel %vm309, %v297, %v301
        %v314 = vsel %vm310, %v298, %v302
        %v315 = vsel %vm311, %v299, %v303
        %v316 = vmax.f32 %v312, 1e-08
        %v317 = vmax.f32 %v313, 1e-08
        %v318 = vmax.f32 %v314, 1e-08
        %v319 = vmax.f32 %v315, 1e-08
        %v320 = vlog2.pop %v316
        %v321 = vmul.f32 %v320, 0.6931472
        %v322 = vlog2.pop %v317
        %v323 = vmul.f32 %v322, 0.6931472
        %v324 = vlog2.pop %v318
        %v325 = vmul.f32 %v324, 0.6931472
        %v326 = vlog2.pop %v319
        %v327 = vmul.f32 %v326, 0.6931472
        %v328 = vmul.f32 %v296, %v296
        %v329 = vmul.f32 %v297, %v297
        %v330 = vmul.f32 %v298, %v298
        %v331 = vmul.f32 %v299, %v299
        %v332 = vmul.f32 %v328, %v328
        %v333 = vmul.f32 %v329, %v329
        %v334 = vmul.f32 %v330, %v330
        %v335 = vmul.f32 %v331, %v331
        %v336 = vsel %vm308, %v300, %v332
        %v337 = vsel %vm309, %v301, %v333
        %v338 = vsel %vm310, %v302, %v334
        %v339 = vsel %vm311, %v303, %v335
        %v340 = vmul.f32 %v321, %v336
        %v341 = vmul.f32 %v323, %v337
        %v342 = vmul.f32 %v325, %v338
        %v343 = vmul.f32 %v327, %v339
        %p344 = scmp.eq.s32.totalorder %s285, 1
        %p345 = scmp.ne.s32.totalorder %s285, 1
        // Predicated region
        $region41: #{tpu_custom_call.1} parent=27 // pred_check
          %p346 = pneg %p345
        $region42: #{tpu_custom_call.1} parent=27 // pred_check_branch
          %348 = sbr.rel (%p346) target = $region44
        $region43: #{tpu_custom_call.1} parent=27 // pred_region
          %v349 = vld [vmem:[#allocation7] sm:$0xff]
          %v350 = vld [vmem:[#allocation7 + $0x8] sm:$0xff]
          %v351 = vadd.f32 %v321, %v325
          %v352 = vadd.f32 %v323, %v327
          %v353 = vadd.f32 %v349, %v351
          %v354 = vadd.f32 %v350, %v352
          %355 = vst [vmem:[#allocation7] sm:$0xff] %v353
          %356 = vst [vmem:[#allocation7 + $0x8] sm:$0xff] %v354
          %s357 = scalar_lea.vmem [#allocation7], 16
          %v358 = vld [vmem:[%s357] sm:$0xff]
          %v359 = vld [vmem:[%s357 + $0x8] sm:$0xff]
          %v360 = vadd.f32 %v340, %v342
          %v361 = vadd.f32 %v341, %v343
          %v362 = vadd.f32 %v358, %v360
          %v363 = vadd.f32 %v359, %v361
          %364 = vst [vmem:[%s357] sm:$0xff] %v362
          %365 = vst [vmem:[%s357 + $0x8] sm:$0xff] %v363
        $region44: #{tpu_custom_call.1} parent=27 // pred_fallthru
          _
        // Predicated region
        $region45: #{tpu_custom_call.1} parent=27 // pred_check
          %p366 = pneg %p344
        $region46: #{tpu_custom_call.1} parent=27 // pred_check_branch
          %368 = sbr.rel (%p366) target = $region48
        $region47: #{tpu_custom_call.1} parent=27 // pred_region
          %v369 = vlaneseq
          %v370 = vshrl.u32 %v369, 7
          %v371 = vadd.s32 %v370, 8
          %s372 = smul.u32 %s285, 16
          %v373 = vstv %s372
          %v374 = vadd.s32 %v373, %v370
          %v375 = vadd.s32 %v373, %v371
          %vm376 = vcmp.lt.s32.totalorder %v374, 20
          %vm377 = vcmp.lt.s32.totalorder %v375, 20
          %v378 = vsel %vm376, 1, 0
          %v379 = vsel %vm377, 1, 0
          %vm380 = vcmp.eq.s32.totalorder %v378, 1
          %vm381 = vcmp.eq.s32.totalorder %v379, 1
          %v382 = vsel %vm380, %v321, 0.0
          %v383 = vsel %vm380, %v323, 0.0
          %v384 = vsel %vm381, %v325, 0.0
          %v385 = vsel %vm381, %v327, 0.0
          %v386 = vsel %vm380, %v340, 0.0
          %v387 = vsel %vm380, %v341, 0.0
          %v388 = vsel %vm381, %v342, 0.0
          %v389 = vsel %vm381, %v343, 0.0
          %v390 = vld [vmem:[#allocation7] sm:$0xff]
          %v391 = vld [vmem:[#allocation7 + $0x8] sm:$0xff]
          %v392 = vadd.f32 %v382, %v384
          %v393 = vadd.f32 %v383, %v385
          %v394 = vadd.f32 %v390, %v392
          %v395 = vadd.f32 %v391, %v393
          %396 = vst [vmem:[#allocation7] sm:$0xff] %v394
          %397 = vst [vmem:[#allocation7 + $0x8] sm:$0xff] %v395
          %s398 = scalar_lea.vmem [#allocation7], 16
          %v399 = vld [vmem:[%s398] sm:$0xff]
          %v400 = vld [vmem:[%s398 + $0x8] sm:$0xff]
          %v401 = vadd.f32 %v386, %v388
          %v402 = vadd.f32 %v387, %v389
          %v403 = vadd.f32 %v399, %v401
          %v404 = vadd.f32 %v400, %v402
          %405 = vst [vmem:[%s398] sm:$0xff] %v403
          %406 = vst [vmem:[%s398 + $0x8] sm:$0xff] %v404
        $region48: #{tpu_custom_call.1} parent=27 // pred_fallthru
          _
        // Predicated region
        $region49: #{tpu_custom_call.1} parent=27 // pred_check
          %p407 = pneg %p129
        $region50: #{tpu_custom_call.1} parent=27 // pred_check_branch
          %409 = sbr.rel (%p407) target = $region52
        $region51: #{tpu_custom_call.1} parent=27 // pred_region
          %s411 = ssub.s32 512, 512
          %412 = vsyncadd [#allocation4], %s411
          %s413 = smul.addr %s25, 4
          %s414 = smul.addr %s413, 128
          %s415 = scalar_lea.hbm %s2, %s414
          %s416 = sshll.u32 [#allocation7], 4
          %s417 = int_to_ptr.vmem [resolvable:$true] %s416
          %422 = dma.vmem_to_hbm [thread:$0]  %s417, 512, %s415, [#allocation4], 256, 256, 16
        $region52: #{tpu_custom_call.1} parent=27 // pred_fallthru
          _
        // Predicated region
        $region53: #{tpu_custom_call.1} parent=27 // pred_check
          %p423 = pneg %p129
        $region54: #{tpu_custom_call.1} parent=27 // pred_check_branch
          %425 = sbr.rel (%p423) target = $region56
        $region55: #{tpu_custom_call.1} parent=27 // pred_region
          %426 = dma.done [#allocation4], 512
        $region56: #{tpu_custom_call.1} parent=27 // pred_fallthru
          _
      $region28: #{tpu_custom_call.1} parent=5 // pred_fallthru
        _
      %p427 = scmp.le.s32.totalorder 2, %s15
      // Predicated region
      $region57: #{tpu_custom_call.1} parent=5 // pred_check
        %p428 = pneg %p427
      $region58: #{tpu_custom_call.1} parent=5 // pred_check_branch
        %430 = sbr.rel (%p428) target = $region60
      $region59: #{tpu_custom_call.1} parent=5 // pred_region
        %s431 = ssub.s32 %s15, 2
      $region60: #{tpu_custom_call.1} parent=5 // pred_fallthru
        _
    $region6: #{tpu_custom_call.1} parent=1 // loop_footer
      %s19 = sadd.s32 1, %s15
    $region7: #{tpu_custom_call.1} parent=1 // loop_footer_branch
      %14 = sbr.rel target = $region3
    $region8: #{tpu_custom_call.1} parent=1 // loop_exit
      _
    %432 = vsyncpa [#allocation3], 1
    %s433 = scalar_lea.sflag [#allocation3], 1
    %434 = vsyncpa %s433, 1
    %435 = vsyncpa [#allocation6], 1
    %s436 = scalar_lea.sflag [#allocation6], 1
    %437 = vsyncpa %s436, 1
    %438 = vsyncpa [#allocation4], 1
    %s439 = scalar_lea.sflag [#allocation4], 1
    %440 = vsyncpa %s439, 1

</llo_original>
